<compile_context>
chip_gen: v5e
topology: v5e:2x2
jax: 0.10.0
libtpu: 0.0.40
codegen_flags: <defaults>
</compile_context>

<pallas_src>
import jax
import jax.numpy as jnp
import numpy as np
from jax.experimental import pallas as pl
from jax.experimental.pallas import tpu as pltpu


def _round_up(x: int, m: int) -> int:
    return (x + m - 1) // m * m


# ---------------------------------------------------------------------------
# Kernel 1: ChannelAttention — tiled streaming reduction over H*W + tiny MLP
# ---------------------------------------------------------------------------
def _make_channel_attention_kernel(hw_total: int, hw_tile: int):
    rem = hw_total % hw_tile
    needs_mask = rem != 0
    inv_hw = 1.0 / float(hw_total)

    def kernel(x_ref, w1t_ref, w2t_ref, o_ref, sum_acc, max_acc):
        k = pl.program_id(1)
        last = pl.num_programs(1) - 1

        @pl.when(k == 0)
        def _init():
            sum_acc[...] = jnp.zeros_like(sum_acc)
            max_acc[...] = jnp.full_like(max_acc, -jnp.inf)

        chunk = x_ref[...].astype(jnp.float32)          # (1, C, T)

        if needs_mask:
            # Steady-state chunks: pure vadd / vmax, no mask overhead.
            @pl.when(k < last)
            def _steady():
                sum_acc[...] += chunk
                max_acc[...] = jnp.maximum(max_acc[...], chunk)

            # Only the final ragged chunk pays iota + compare + select.
            @pl.when(k == last)
            def _tail():
                lane = jax.lax.broadcasted_iota(jnp.int32, chunk.shape, 2)
                valid = lane < rem
                sum_acc[...] += jnp.where(valid, chunk, 0.0)
                # NOTE: -inf fill assumes a float activation dtype (not int/quant).
                max_acc[...] = jnp.maximum(
                    max_acc[...], jnp.where(valid, chunk, -jnp.inf))
        else:
            sum_acc[...] += chunk
            max_acc[...] = jnp.maximum(max_acc[...], chunk)

        @pl.when(k == last)
        def _finalize():
            # Single cross-lane (XLU) reduce per batch, then the tiny MLP.
            avg = jnp.sum(sum_acc[...], axis=-1) * inv_hw   # (1, C)
            mx = jnp.max(max_acc[...], axis=-1)             # (1, C)
            p = jnp.concatenate([avg, mx], axis=0)          # (2, C): fused branches
            w1t = w1t_ref[...].astype(jnp.float32)          # (C, hidden)
            w2t = w2t_ref[...].astype(jnp.float32)          # (hidden, C)
            h = jnp.maximum(jnp.dot(p, w1t, preferred_element_type=jnp.float32), 0.0)
            l2 = jnp.dot(h, w2t, preferred_element_type=jnp.float32)   # (2, C)
            logits = l2[0:1, :] + l2[1:2, :]                # (1, C)
            o_ref[...] = jax.nn.sigmoid(logits)[None].astype(o_ref.dtype)  # (1,1,C)

    return kernel


def _channel_attention(x_flat, w1t, w2t, hw_tile):
    B, C, HW = x_flat.shape
    hidden = w1t.shape[1]
    n_k = pl.cdiv(HW, hw_tile)
    kernel = _make_channel_attention_kernel(HW, hw_tile)
    return pl.pallas_call(
        kernel,
        out_shape=jax.ShapeDtypeStruct((B, 1, C), jnp.float32),
        grid_spec=pltpu.PrefetchScalarGridSpec(
            num_scalar_prefetch=0,
            grid=(B, n_k),
            in_specs=[
                pl.BlockSpec((1, C, hw_tile), lambda b, k: (b, 0, k)),
                # Constant index maps: weights DMA'd once, stay resident in VMEM.
                pl.BlockSpec((C, hidden), lambda b, k: (0, 0)),
                pl.BlockSpec((hidden, C), lambda b, k: (0, 0)),
            ],
            out_specs=pl.BlockSpec((1, 1, C), lambda b, k: (b, 0, 0)),
            scratch_shapes=[pltpu.VMEM((1, C, hw_tile), jnp.float32),   # running sum
                            pltpu.VMEM((1, C, hw_tile), jnp.float32)],  # running max
        ),
        compiler_params=pltpu.CompilerParams(
            dimension_semantics=("parallel", "arbitrary")),
    )(x_flat, w1t, w2t)


# ---------------------------------------------------------------------------
# Kernel 2: channel-wise mean/max stats of x1 = ca * x  (no x1 writeback)
# ---------------------------------------------------------------------------
def _ca_stats_kernel(ca_ref, x_ref, stats_ref):
    ca = ca_ref[...].astype(jnp.float32)                 # (1, C, 1), C on sublanes
    x = x_ref[...].astype(jnp.float32)                   # (1, C, T)
    x1 = x * ca                                          # broadcast along lanes
    mean_c = jnp.mean(x1, axis=1, keepdims=True)         # (1, 1, T)
    max_c = jnp.max(x1, axis=1, keepdims=True)           # (1, 1, T)
    # Ragged-tail blocks compute garbage in OOB lanes; Pallas masks the HBM
    # writeback to in-bounds elements, so those lanes never land in `stats`.
    stats_ref[...] = jnp.concatenate([mean_c, max_c], axis=1).astype(stats_ref.dtype)


def _ca_stats(ca_col, x_flat, hw_tile):
    B, C, HW = x_flat.shape
    n_k = pl.cdiv(HW, hw_tile)
    return pl.pallas_call(
        _ca_stats_kernel,
        out_shape=jax.ShapeDtypeStruct((B, 2, HW), x_flat.dtype),
        grid_spec=pltpu.PrefetchScalarGridSpec(
            num_scalar_prefetch=0,
            grid=(B, n_k),
            in_specs=[
                pl.BlockSpec((1, C, 1), lambda b, k: (b, 0, 0)),
                pl.BlockSpec((1, C, hw_tile), lambda b, k: (b, 0, k)),
            ],
            out_specs=pl.BlockSpec((1, 2, hw_tile), lambda b, k: (b, 0, k)),
        ),
        compiler_params=pltpu.CompilerParams(
            dimension_semantics=("parallel", "parallel")),
    )(ca_col, x_flat)


# ---------------------------------------------------------------------------
# Kernel 3a: 7x7 spatial-attention conv (2->1 channels) + sigmoid on the tiny
#            pre-padded stats map (per-batch resident block)
# ---------------------------------------------------------------------------
def _make_sa_conv_kernel(H: int, W: int, ksz: int):
    def kernel(w_ref, stats_ref, sa_ref):
        # w_ref: SMEM (2*ksz*ksz,) f32 ; stats_ref: (1, 2, H+2p, Wp) (zero pre-padded,
        # lane-aligned Wp).
        s = stats_ref[...].astype(jnp.float32)
        acc = jnp.zeros((H, W), jnp.float32)
        for c in range(2):
            for kx in range(ksz):
                # One lane-shifted slab per (c, kx): 14 lane shifts total instead
                # of 2*7*7 = 98 independently shifted (H, W) slices.
                slab = s[0, c, :, kx:kx + W]             # (H+2p, W)
                for ky in range(ksz):
                    wv = w_ref[c * ksz * ksz + ky * ksz + kx]
                    acc = acc + wv * slab[ky:ky + H, :]  # cheap row-offset slice
        sa_ref[...] = jax.nn.sigmoid(acc)[None, None].astype(sa_ref.dtype)

    return kernel


def _sa_conv(w_sp_flat, stats_pad, H, W, ksz):
    B, _, Hp, Wp = stats_pad.shape
    kernel = _make_sa_conv_kernel(H, W, ksz)
    return pl.pallas_call(
        kernel,
        out_shape=jax.ShapeDtypeStruct((B, 1, H, W), jnp.float32),
        grid_spec=pltpu.PrefetchScalarGridSpec(
            num_scalar_prefetch=0,
            grid=(B,),
            in_specs=[
                pl.BlockSpec(memory_space=pltpu.MemorySpace.SMEM),  # conv weights
                pl.BlockSpec((1, 2, Hp, Wp), lambda b: (b, 0, 0, 0)),
            ],
            out_specs=pl.BlockSpec((1, 1, H, W), lambda b: (b, 0, 0, 0)),
        ),
        compiler_params=pltpu.CompilerParams(
            dimension_semantics=("parallel",)),
    )(w_sp_flat, stats_pad)


# ---------------------------------------------------------------------------
# Kernel 3b: final apply, lane-dense streamed:  out = sa * (ca * x)
# ---------------------------------------------------------------------------
def _apply_kernel(ca_ref, sa_ref, x_ref, o_ref):
    ca = ca_ref[...].astype(jnp.float32)                 # (1, C, 1)
    sa = sa_ref[...].astype(jnp.float32)                 # (1, 1, T)
    x = x_ref[...].astype(jnp.float32)                   # (1, C, T)
    # Recompute x1 = ca * x on the fly (VALU mul under the HBM stream) instead
    # of reading a materialized x1 back from HBM.
    o_ref[...] = (x * ca * sa).astype(o_ref.dtype)


def _apply(ca_col, sa_flat, x_flat, hw_tile):
    B, C, HW = x_flat.shape
    n_k = pl.cdiv(HW, hw_tile)
    return pl.pallas_call(
        _apply_kernel,
        out_shape=jax.ShapeDtypeStruct((B, C, HW), x_flat.dtype),
        grid_spec=pltpu.PrefetchScalarGridSpec(
            num_scalar_prefetch=0,
            grid=(B, n_k),
            in_specs=[
                pl.BlockSpec((1, C, 1), lambda b, k: (b, 0, 0)),
                pl.BlockSpec((1, 1, hw_tile), lambda b, k: (b, 0, k)),
                pl.BlockSpec((1, C, hw_tile), lambda b, k: (b, 0, k)),
            ],
            out_specs=pl.BlockSpec((1, C, hw_tile), lambda b, k: (b, 0, k)),
        ),
        compiler_params=pltpu.CompilerParams(
            dimension_semantics=("parallel", "parallel")),
    )(ca_col, sa_flat, x_flat)


# ---------------------------------------------------------------------------
# Wrapper
# ---------------------------------------------------------------------------
def _pick_hw_tile(hw, bytes_per_hw_pos, target_bytes=2 << 20):
    """Largest 128-multiple lane tile keeping a (1, C, T) block near target_bytes."""
    max_lanes = max(128, (target_bytes // max(int(bytes_per_hw_pos), 1)) // 128 * 128)
    if hw <= max_lanes:
        return int(hw)      # full-dim block: always legal, no tail mask needed
    return int(max_lanes)


def cbam(x, w1, w2, w_sp, hw_tile=None):
    """CBAM forward. x: (B,C,H,W); w1: (C//r, C); w2: (C, C//r); w_sp: (1,2,k,k)."""
    B, C, H, W = x.shape
    HW = H * W
    ksz = w_sp.shape[-1]
    pad = ksz // 2

    if hw_tile is None:
        hw_tile = _pick_hw_tile(HW, C * x.dtype.itemsize)

    x_flat = x.reshape(B, C, HW)
    w1t = jnp.transpose(w1)   # (C, hidden)
    w2t = jnp.transpose(w2)   # (hidden, C)

    # 1) Channel attention weights (B, 1, C) f32; tiny reshape puts C on sublanes.
    ca = _channel_attention(x_flat, w1t, w2t, hw_tile)
    ca_col = ca.reshape(B, C, 1)

    # 2) Channel-wise mean/max stats of x1 = ca*x (x1 itself is never written).
    stats_flat = _ca_stats(ca_col, x_flat, hw_tile)          # (B, 2, HW), x.dtype
    stats = stats_flat.reshape(B, 2, H, W)

    # Zero-pad the tiny stats map (H halo + lane-aligned W) in plain JAX so the
    # conv kernel only needs static slices and a lane-clean base layout.
    Wp = W + 2 * pad
    Wp_al = _round_up(Wp, 128)
    stats_pad = jnp.pad(stats, ((0, 0), (0, 0),
                                (pad, pad), (pad, pad + (Wp_al - Wp))))
    w_sp_flat = w_sp.reshape(-1).astype(jnp.float32)         # (2*k*k,) scalars, SMEM

    # 3a) Spatial attention map sa = sigmoid(conv7x7(stats)), per batch.
    sa = _sa_conv(w_sp_flat, stats_pad, H, W, ksz)           # (B, 1, H, W) f32
    sa_flat = sa.reshape(B, 1, HW)

    # 3b) Final lane-dense streamed apply: out = sa * ca * x.
    out_flat = _apply(ca_col, sa_flat, x_flat, hw_tile)      # (B, C, HW)
    return out_flat.reshape(B, C, H, W)


# ---------------------------------------------------------------------------
# Pure-JAX reference mirroring the PyTorch CBAM forward
# ---------------------------------------------------------------------------
def cbam_ref(x, w1, w2, w_sp):
    B, C, H, W = x.shape
    avg = jnp.mean(x, axis=(2, 3))
    mx = jnp.max(x, axis=(2, 3))

    def fc(p):
        return jnp.maximum(p @ w1.T, 0.0) @ w2.T

    ca = jax.nn.sigmoid(fc(avg) + fc(mx)).reshape(B, C, 1, 1)
    x1 = ca * x
    stats = jnp.concatenate([jnp.mean(x1, axis=1, keepdims=True),
                             jnp.max(x1, axis=1, keepdims=True)], axis=1)
    pad = w_sp.shape[-1] // 2
    sa = jax.lax.conv_general_dilated(
        stats, w_sp, window_strides=(1, 1),
        padding=((pad, pad), (pad, pad)),
        dimension_numbers=("NCHW", "OIHW", "NCHW"))
    sa = jax.nn.sigmoid(sa)
    return sa * x1


if __name__ == "__main__":
    key = jax.random.PRNGKey(0)
    k_x, k_w1, k_w2, k_ws, k_x2 = jax.random.split(key, 5)

    B, C = 2, 32
    ratio = 16
    hidden = C // ratio          # 2
    ksz = 7

    w1 = jax.random.normal(k_w1, (hidden, C), dtype=jnp.float32) * (2.0 / C) ** 0.5
    w2 = jax.random.normal(k_w2, (C, hidden), dtype=jnp.float32) * (2.0 / hidden) ** 0.5
    w_sp = jax.random.normal(k_ws, (1, 2, ksz, ksz), dtype=jnp.float32) * (1.0 / (2 * ksz * ksz)) ** 0.5

    # Case 1: H*W divisible by the tile — multi-step pipelined reduction, no mask.
    H, W = 16, 16
    x = jax.random.normal(k_x, (B, C, H, W), dtype=jnp.float32)
    out = jax.block_until_ready(cbam(x, w1, w2, w_sp, hw_tile=128))
    ref = cbam_ref(x, w1, w2, w_sp)
    assert out.shape == (B, C, H, W)
    np.testing.assert_allclose(np.asarray(out), np.asarray(ref), rtol=1e-5, atol=1e-5)

    # Case 2: ragged tail (H*W % tile != 0) — exercises the last-chunk masked path
    # and the partial-block writeback in kernels 2 and 3b.
    H2, W2 = 12, 12              # HW = 144, tile = 128
    x2 = jax.random.normal(k_x2, (B, C, H2, W2), dtype=jnp.float32)
    out2 = jax.block_until_ready(cbam(x2, w1, w2, w_sp, hw_tile=128))
    ref2 = cbam_ref(x2, w1, w2, w_sp)
    np.testing.assert_allclose(np.asarray(out2), np.asarray(ref2), rtol=1e-5, atol=1e-5)

    print("KERNEL_OK")
</pallas_src>

<mosaic_0001>
module attributes {stable_mosaic.version = 11 : i64} {
  func.func @kernel(%arg0: i32, %arg1: i32, %arg2: memref<1x32x128xf32, #tpu.memory_space<vmem>>, %arg3: memref<32x2xf32, #tpu.memory_space<vmem>>, %arg4: memref<2x32xf32, #tpu.memory_space<vmem>>, %arg5: memref<1x1x32xf32, #tpu.memory_space<vmem>>, %arg6: memref<1x32x128xf32, #tpu.memory_space<vmem>>, %arg7: memref<1x32x128xf32, #tpu.memory_space<vmem>>) attributes {dimension_semantics = [#tpu.dimension_semantics<parallel>, #tpu.dimension_semantics<arbitrary>], iteration_bounds = array<i64: 2, 2>, scalar_prefetch = 0 : i64, scratch_operands = 2 : i64, tpu.core_type = #tpu.core_type<tc>, window_params = [{transform_indices = @transform_0, window_bounds = array<i64: 1, 32, 128>}, {pipeline_mode = #tpu.pipeline_mode<synchronous>, transform_indices = @transform_1, window_bounds = array<i64: 32, 2>}, {pipeline_mode = #tpu.pipeline_mode<synchronous>, transform_indices = @transform_2, window_bounds = array<i64: 2, 32>}, {transform_indices = @transform_3, window_bounds = array<i64: 1, 1, 32>}]} {
    %c0_i32 = arith.constant 0 : i32
    %0 = arith.cmpi eq, %arg1, %c0_i32 : i32
    %1 = arith.extui %0 : i1 to i32
    %c0_i32_0 = arith.constant 0 : i32
    %2 = arith.cmpi ne, %1, %c0_i32_0 : i32
    scf.if %2 {
      %cst = arith.constant 0.000000e+00 : f32
      %13 = vector.broadcast %cst : f32 to vector<1x32x128xf32>
      %c0_16 = arith.constant 0 : index
      %c0_17 = arith.constant 0 : index
      %c0_18 = arith.constant 0 : index
      %14 = vector.load %arg6[%c0_16, %c0_17, %c0_18] : memref<1x32x128xf32, #tpu.memory_space<vmem>>, vector<1x32x128xf32>
      tpu.vector_store %arg6[%c0_16, %c0_17, %c0_18], %13 {strides = array<i32>} : memref<1x32x128xf32, #tpu.memory_space<vmem>>, vector<1x32x128xf32>,
      %cst_19 = arith.constant 0xFF800000 : f32
      %15 = vector.broadcast %cst_19 : f32 to vector<1x32x128xf32>
      %c0_20 = arith.constant 0 : index
      %c0_21 = arith.constant 0 : index
      %c0_22 = arith.constant 0 : index
      %16 = vector.load %arg7[%c0_20, %c0_21, %c0_22] : memref<1x32x128xf32, #tpu.memory_space<vmem>>, vector<1x32x128xf32>
      tpu.vector_store %arg7[%c0_20, %c0_21, %c0_22], %15 {strides = array<i32>} : memref<1x32x128xf32, #tpu.memory_space<vmem>>, vector<1x32x128xf32>,
    } else {
    }
    %c0 = arith.constant 0 : index
    %c0_1 = arith.constant 0 : index
    %c0_2 = arith.constant 0 : index
    %3 = vector.load %arg2[%c0, %c0_1, %c0_2] : memref<1x32x128xf32, #tpu.memory_space<vmem>>, vector<1x32x128xf32>
    %c0_3 = arith.constant 0 : index
    %c0_4 = arith.constant 0 : index
    %c0_5 = arith.constant 0 : index
    %4 = vector.load %arg6[%c0_3, %c0_4, %c0_5] : memref<1x32x128xf32, #tpu.memory_space<vmem>>, vector<1x32x128xf32>
    %5 = arith.addf %4, %3 : vector<1x32x128xf32>
    %c0_6 = arith.constant 0 : index
    %c0_7 = arith.constant 0 : index
    %c0_8 = arith.constant 0 : index
    %6 = vector.load %arg6[%c0_6, %c0_7, %c0_8] : memref<1x32x128xf32, #tpu.memory_space<vmem>>, vector<1x32x128xf32>
    tpu.vector_store %arg6[%c0_6, %c0_7, %c0_8], %5 {strides = array<i32>} : memref<1x32x128xf32, #tpu.memory_space<vmem>>, vector<1x32x128xf32>,
    %c0_9 = arith.constant 0 : index
    %c0_10 = arith.constant 0 : index
    %c0_11 = arith.constant 0 : index
    %7 = vector.load %arg7[%c0_9, %c0_10, %c0_11] : memref<1x32x128xf32, #tpu.memory_space<vmem>>, vector<1x32x128xf32>
    %8 = arith.maximumf %7, %3 : vector<1x32x128xf32>
    %c0_12 = arith.constant 0 : index
    %c0_13 = arith.constant 0 : index
    %c0_14 = arith.constant 0 : index
    %9 = vector.load %arg7[%c0_12, %c0_13, %c0_14] : memref<1x32x128xf32, #tpu.memory_space<vmem>>, vector<1x32x128xf32>
    tpu.vector_store %arg7[%c0_12, %c0_13, %c0_14], %8 {strides = array<i32>} : memref<1x32x128xf32, #tpu.memory_space<vmem>>, vector<1x32x128xf32>,
    %c1_i32 = arith.constant 1 : i32
    %10 = arith.cmpi eq, %arg1, %c1_i32 : i32
    %11 = arith.extui %10 : i1 to i32
    %c0_i32_15 = arith.constant 0 : i32
    %12 = arith.cmpi ne, %11, %c0_i32_15 : i32
    scf.if %12 {
      %c0_16 = arith.constant 0 : index
      %c0_17 = arith.constant 0 : index
      %c0_18 = arith.constant 0 : index
      %13 = vector.load %arg6[%c0_16, %c0_17, %c0_18] : memref<1x32x128xf32, #tpu.memory_space<vmem>>, vector<1x32x128xf32>
      %cst = arith.constant dense<0.000000e+00> : vector<1x32xf32>
      %14 = vector.multi_reduction <add>, %13, %cst [2] : vector<1x32x128xf32> to vector<1x32xf32>
      %cst_19 = arith.constant 3.906250e-03 : f32
      %15 = vector.broadcast %cst_19 : f32 to vector<1x32xf32>
      %16 = arith.mulf %14, %15 : vector<1x32xf32>
      %c0_20 = arith.constant 0 : index
      %c0_21 = arith.constant 0 : index
      %c0_22 = arith.constant 0 : index
      %17 = vector.load %arg7[%c0_20, %c0_21, %c0_22] : memref<1x32x128xf32, #tpu.memory_space<vmem>>, vector<1x32x128xf32>
      %cst_23 = arith.constant dense<0xFF800000> : vector<1x32xf32>
      %18 = vector.multi_reduction <maximumf>, %17, %cst_23 [2] : vector<1x32x128xf32> to vector<1x32xf32>
      %19 = tpu.concatenate %16, %18 in 0 : vector<1x32xf32>, vector<1x32xf32> -> vector<2x32xf32>
      %c0_24 = arith.constant 0 : index
      %c0_25 = arith.constant 0 : index
      %20 = vector.load %arg3[%c0_24, %c0_25] : memref<32x2xf32, #tpu.memory_space<vmem>>, vector<32x2xf32>
      %c0_26 = arith.constant 0 : index
      %c0_27 = arith.constant 0 : index
      %21 = vector.load %arg4[%c0_26, %c0_27] : memref<2x32xf32, #tpu.memory_space<vmem>>, vector<2x32xf32>
      %cst_28 = arith.constant dense<0.000000e+00> : vector<2x2xf32>
      %22 = tpu.matmul %19, %20, %cst_28 {dimension_numbers = #tpu.dot_dimension_numbers<[1], [0], [0], [1], [0, 0, 1, 1], [], []>} : vector<2x32xf32>, vector<32x2xf32>, vector<2x2xf32> -> vector<2x2xf32>
      %cst_29 = arith.constant 0.000000e+00 : f32
      %23 = vector.broadcast %cst_29 : f32 to vector<2x2xf32>
      %24 = arith.maximumf %22, %23 : vector<2x2xf32>
      %cst_30 = arith.constant dense<0.000000e+00> : vector<2x32xf32>
      %25 = tpu.matmul %24, %21, %cst_30 {dimension_numbers = #tpu.dot_dimension_numbers<[1], [0], [0], [1], [0, 0, 1, 1], [], []>} : vector<2x2xf32>, vector<2x32xf32>, vector<2x32xf32> -> vector<2x32xf32>
      %26 = vector.extract_strided_slice %25 {offsets = [0, 0], sizes = [1, 32], strides = [1, 1]} : vector<2x32xf32> to vector<1x32xf32>
      %27 = vector.extract_strided_slice %25 {offsets = [1, 0], sizes = [1, 32], strides = [1, 1]} : vector<2x32xf32> to vector<1x32xf32>
      %28 = arith.addf %26, %27 : vector<1x32xf32>
      %29 = arith.negf %28 : vector<1x32xf32>
      %30 = math.exp %29 : vector<1x32xf32>
      %cst_31 = arith.constant 1.000000e+00 : f32
      %31 = vector.broadcast %cst_31 : f32 to vector<1x32xf32>
      %32 = arith.addf %31, %30 : vector<1x32xf32>
      %33 = arith.divf %31, %32 : vector<1x32xf32>
      %34 = vector.shape_cast %33 : vector<1x32xf32> to vector<1x1x32xf32>
      %c0_32 = arith.constant 0 : index
      %c0_33 = arith.constant 0 : index
      %c0_34 = arith.constant 0 : index
      %35 = vector.load %arg5[%c0_32, %c0_33, %c0_34] : memref<1x1x32xf32, #tpu.memory_space<vmem>>, vector<1x1x32xf32>
      tpu.vector_store %arg5[%c0_32, %c0_33, %c0_34], %34 {strides = array<i32>} : memref<1x1x32xf32, #tpu.memory_space<vmem>>, vector<1x1x32xf32>,
    } else {
    }
    return
  }
  func.func @transform_0(%arg0: i32, %arg1: i32) -> (i32, i32, i32) {
    %c0_i32 = arith.constant 0 : i32
    %c0_i32_0 = arith.constant 0 : i32
    return %arg0, %c0_i32, %arg1 : i32, i32, i32
  }
  func.func @transform_1(%arg0: i32, %arg1: i32) -> (i32, i32) {
    %c0_i32 = arith.constant 0 : i32
    %c0_i32_0 = arith.constant 0 : i32
    %c0_i32_1 = arith.constant 0 : i32
    return %c0_i32, %c0_i32_0 : i32, i32
  }
  func.func @transform_2(%arg0: i32, %arg1: i32) -> (i32, i32) {
    %c0_i32 = arith.constant 0 : i32
    %c0_i32_0 = arith.constant 0 : i32
    %c0_i32_1 = arith.constant 0 : i32
    return %c0_i32, %c0_i32_0 : i32, i32
  }
  func.func @transform_3(%arg0: i32, %arg1: i32) -> (i32, i32, i32) {
    %c0_i32 = arith.constant 0 : i32
    %c0_i32_0 = arith.constant 0 : i32
    %c0_i32_1 = arith.constant 0 : i32
    return %arg0, %c0_i32, %c0_i32_0 : i32, i32, i32
  }
}

</mosaic_0001>

<llo_original>
// kernel: tpu_custom_call.1
$region0: #{tpu_custom_call.1}
  #allocation0 [shape = 'u32[]', space=smem, size = 0x4, offset = 0x4, fixed_abs, tag = 'smem constant byte address 0x4 - core index']
  #allocation1 [shape = 'u32[72,128]{1,0:T(1,128)}', space=vmem, size = 0x9000, scoped, tag = 'internal scratch']
  #allocation2 [shape = 'f32[1,32,128]{2,1,0:T(8,128)}', space=vmem, size = 0x4000, scoped, tag = 'scratch operand']
  #allocation3 [shape = 'f32[1,32,128]{2,1,0:T(8,128)}', space=vmem, size = 0x4000, scoped, tag = 'scratch operand']
  %s0 = inlined_call_operand.hbm [shape: f32[2,32,256], index: 0, kind: input, shape index: {}]
  %s1 = inlined_call_operand.vmem [shape: f32[32,2], index: 1, kind: input, shape index: {}]
  %s2 = inlined_call_operand.vmem [shape: f32[2,32], index: 2, kind: input, shape index: {}]
  %s3 = inlined_call_operand.hbm [shape: f32[2,1,32], index: 3, kind: output, shape index: {}]
  %s4 = sld [smem:[#allocation0]]
  $region57: #{tpu_custom_call.1} parent=0
    _
  %s6 = ssub.s32 1, %s4
  %s7 = scalar_select 0, %s6, %s4
  $region1: #{tpu_custom_call.1} parent=0
    #allocation4 [shape = 'u8[32768]{0}', space=vmem, size = 0x8000, scoped, tag = 'input window, operand 0']
    #allocation5 [shape = 's32[2]{0}', space=sflag, size = 0x8, scoped, tag = 'scoped memory for tpu_custom_call.1']
    #allocation6 [shape = 's32[2]{0}', space=sflag, size = 0x8, scoped, tag = 'scoped memory for tpu_custom_call.1']
    #allocation7 [shape = 'u8[1024]{0}', space=vmem, size = 0x400, scoped, tag = 'output window, operand 0']
    %8 = vsyncpa [#allocation5], 0
    %s9 = scalar_lea.sflag [#allocation5], 1
    %10 = vsyncpa %s9, 0
    %11 = vsyncpa [#allocation6], 0
    %s12 = scalar_lea.sflag [#allocation6], 1
    %13 = vsyncpa %s12, 0
    loop: start=0, step=1, limit=6
    $region2: #{tpu_custom_call.1} parent=1 // loop_pre_header
      _
    $region3: #{tpu_custom_call.1} parent=1 // loop_header
      %s15 = sphi 0, %s19
      %p16 = scmp.ge.s32.totalorder %s15, 6
      %s22 = sphi 0, %s34
      %s23 = sphi 0, %s30
      %s24 = sphi 0, %s22
      %s25 = sphi 0, %s23
      %s26 = sphi 0, %s24
      %s27 = sphi 0, %s25
      %s39 = sphi 0, %s41
      %s42 = sphi 0, %s39
      %s43 = sphi 0, %s42
      %s59 = sphi 0, %s43
      %s63 = sphi 0, %s63
      %s65 = sphi 0, %s63
      %s66 = sphi 0, %s65
      %s80 = sphi 0, %s66
      %s84 = sphi 0, %s84
      %s86 = sphi 0, %s84
      %s87 = sphi 0, %s86
      %s101 = sphi 0, %s87
      %s107 = sphi 0, %s109
      %s110 = sphi 0, %s107
      %s111 = sphi 0, %s110
      %s127 = sphi 0, %s111
    $region4: #{tpu_custom_call.1} parent=1 // loop_header_branch
      %18 = sbr.rel (%p16) target = $region8
    $region5: #{tpu_custom_call.1} parent=1 // loop_body
      %s20 = ssub.s32 %s15, 1
      %s21 = ssub.s32 %s15, 2
      %s28 = sadd.s32 1, %s23
      %p29 = scmp.ge.s32.totalorder %s28, 2
      %s30 = scalar_select %p29, 0, %s28
      %s31 = sadd.s32 1, %s22
      %s32 = scalar_select %p29, %s31, %s22
      %p33 = scmp.ge.s32.totalorder %s32, 2
      %s34 = scalar_select %p33, 0, %s32
      %s35 = ssub.s32 %s22, %s34
      %s36 = ssub.s32 %s23, %s30
      %s37 = sor.u32 %s35, %s36
      %p38 = scmp.eq.s32.totalorder %s37, 0
      %s40 = sadd.s32 %s39, 1
      %s41 = scalar_select %p38, %s39, %s40
      %p44 = pneg %p38
      %p45 = scmp.eq.s32.totalorder %s15, 3
      %p46 = por %p44, %p45
      %p47 = scmp.ne.s32.totalorder %s39, %s42
      %p48 = scmp.eq.s32.totalorder %s15, 0
      %p49 = por %p47, %p48
      %p50 = scmp.ne.s32.totalorder %s39, %s42
      %p51 = scmp.eq.s32.totalorder %s20, 3
      %p52 = por %p50, %p51
      %p53 = scmp.ne.s32.totalorder %s42, %s43
      %p54 = scmp.eq.s32.totalorder %s20, 0
      %p55 = por %p53, %p54
      %p56 = scmp.ne.s32.totalorder %s42, %s43
      %p57 = scmp.eq.s32.totalorder %s21, 3
      %p58 = por %p56, %p57
      %p60 = scmp.ne.s32.totalorder %s43, %s59
      %p61 = scmp.eq.s32.totalorder %s21, 0
      %p62 = por %p60, %p61
      %s64 = sadd.s32 %s63, 1
      %p67 = scmp.eq.s32.totalorder %s15, 3
      %p68 = scmp.ne.s32.totalorder %s63, %s65
      %p69 = scmp.eq.s32.totalorder %s15, 0
      %p70 = por %p68, %p69
      %p71 = scmp.ne.s32.totalorder %s63, %s65
      %p72 = scmp.eq.s32.totalorder %s20, 3
      %p73 = por %p71, %p72
      %p74 = scmp.ne.s32.totalorder %s65, %s66
      %p75 = scmp.eq.s32.totalorder %s20, 0
      %p76 = por %p74, %p75
      %p77 = scmp.ne.s32.totalorder %s65, %s66
      %p78 = scmp.eq.s32.totalorder %s21, 3
      %p79 = por %p77, %p78
      %p81 = scmp.ne.s32.totalorder %s66, %s80
      %p82 = scmp.eq.s32.totalorder %s21, 0
      %p83 = por %p81, %p82
      %s85 = sadd.s32 %s84, 1
      %p88 = scmp.eq.s32.totalorder %s15, 3
      %p89 = scmp.ne.s32.totalorder %s84, %s86
      %p90 = scmp.eq.s32.totalorder %s15, 0
      %p91 = por %p89, %p90
      %p92 = scmp.ne.s32.totalorder %s84, %s86
      %p93 = scmp.eq.s32.totalorder %s20, 3
      %p94 = por %p92, %p93
      %p95 = scmp.ne.s32.totalorder %s86, %s87
      %p96 = scmp.eq.s32.totalorder %s20, 0
      %p97 = por %p95, %p96
      %p98 = scmp.ne.s32.totalorder %s86, %s87
      %p99 = scmp.eq.s32.totalorder %s21, 3
      %p100 = por %p98, %p99
      %p102 = scmp.ne.s32.totalorder %s87, %s101
      %p103 = scmp.eq.s32.totalorder %s21, 0
      %p104 = por %p102, %p103
      %s105 = ssub.s32 %s22, %s34
      %p106 = scmp.eq.s32.totalorder %s105, 0
      %s108 = sadd.s32 %s107, 1
      %s109 = scalar_select %p106, %s107, %s108
      %p112 = pneg %p106
      %p113 = scmp.eq.s32.totalorder %s15, 3
      %p114 = por %p112, %p113
      %p115 = scmp.ne.s32.totalorder %s107, %s110
      %p116 = scmp.eq.s32.totalorder %s15, 0
      %p117 = por %p115, %p116
      %p118 = scmp.ne.s32.totalorder %s107, %s110
      %p119 = scmp.eq.s32.totalorder %s20, 3
      %p120 = por %p118, %p119
      %p121 = scmp.ne.s32.totalorder %s110, %s111
      %p122 = scmp.eq.s32.totalorder %s20, 0
      %p123 = por %p121, %p122
      %p124 = scmp.ne.s32.totalorder %s110, %s111
      %p125 = scmp.eq.s32.totalorder %s21, 3
      %p126 = por %p124, %p125
      %p128 = scmp.ne.s32.totalorder %s111, %s127
      %p129 = scmp.eq.s32.totalorder %s21, 0
      %p130 = por %p128, %p129
      %p131 = scmp.le.s32.totalorder 1, %s15
      %p132 = scmp.lt.s32.totalorder %s15, 5
      %p133 = pnand %p131, %p132
      %p134 = pneg %p133
      // Predicated region
      $region9: #{tpu_custom_call.1} parent=5 // pred_check
        _
      $region10: #{tpu_custom_call.1} parent=5 // pred_check_branch
        %136 = sbr.rel (%p133) target = $region12
      $region11: #{tpu_custom_call.1} parent=5 // pred_region
        %s137 = ssub.s32 %s15, 1
        // Predicated region
        $region13: #{tpu_custom_call.1} parent=11 // pred_check
          %p138 = pneg %p76
        $region14: #{tpu_custom_call.1} parent=11 // pred_check_branch
          %140 = sbr.rel (%p138) target = $region16
        $region15: #{tpu_custom_call.1} parent=11 // pred_region
          _
        $region16: #{tpu_custom_call.1} parent=11 // pred_fallthru
          _
        // Predicated region
        $region17: #{tpu_custom_call.1} parent=11 // pred_check
          %p141 = pneg %p97
        $region18: #{tpu_custom_call.1} parent=11 // pred_check_branch
          %143 = sbr.rel (%p141) target = $region20
        $region19: #{tpu_custom_call.1} parent=11 // pred_region
          _
        $region20: #{tpu_custom_call.1} parent=11 // pred_fallthru
          _
      $region12: #{tpu_custom_call.1} parent=5 // pred_fallthru
        _
      %p144 = scmp.lt.s32.totalorder %s15, 4
      // Predicated region
      $region21: #{tpu_custom_call.1} parent=5 // pred_check
        %p145 = pneg %p144
      $region22: #{tpu_custom_call.1} parent=5 // pred_check_branch
        %147 = sbr.rel (%p145) target = $region24
      $region23: #{tpu_custom_call.1} parent=5 // pred_region
        // Predicated region
        $region25: #{tpu_custom_call.1} parent=23 // pred_check
          %p148 = pneg %p49
        $region26: #{tpu_custom_call.1} parent=23 // pred_check_branch
          %150 = sbr.rel (%p148) target = $region28
        $region27: #{tpu_custom_call.1} parent=23 // pred_region
          %s151 = sand.u32 %s39, 1
          %s152 = scalar_lea.sflag [#allocation5], %s151
          %s153 = sand.u32 %s39, 1
          %s154 = smul.addr %s153, 32
          %s155 = scalar_lea.vmem [#allocation4], %s154
          %157 = vsyncadd %s152, 0
          %s158 = smul.addr %s22, 8
          %s159 = sadd.s32 %s23, %s158
          %s160 = smul.addr %s159, 8
          %s161 = scalar_lea.hbm %s0, %s160
          %s162 = sshll.u32 %s161, 4
          %s163 = int_to_ptr.hbm [resolvable:$true] %s162
          %s164 = sshll.u32 %s155, 4
          %s165 = int_to_ptr.vmem [resolvable:$true] %s164
          %170 = dma.hbm_to_vmem [thread:$0]  %s163, 512, %s165, %s152, 256, 128, 8
        $region28: #{tpu_custom_call.1} parent=23 // pred_fallthru
          _
      $region24: #{tpu_custom_call.1} parent=5 // pred_fallthru
        _
      %p171 = scmp.le.s32.totalorder 1, %s15
      %p172 = scmp.lt.s32.totalorder %s15, 5
      %p173 = pnand %p171, %p172
      %p174 = pneg %p173
      // Predicated region
      $region29: #{tpu_custom_call.1} parent=5 // pred_check
        _
      $region30: #{tpu_custom_call.1} parent=5 // pred_check_branch
        %176 = sbr.rel (%p173) target = $region32
      $region31: #{tpu_custom_call.1} parent=5 // pred_region
        %s177 = ssub.s32 %s15, 1
        %s178 = sand.u32 %s42, 1
        %s179 = scalar_lea.sflag [#allocation5], %s178
        %s180 = sand.u32 %s42, 1
        %s181 = smul.addr %s180, 32
        %s182 = scalar_lea.vmem [#allocation4], %s181
        // Predicated region
        $region33: #{tpu_custom_call.1} parent=31 // pred_check
          %p183 = pneg %p55
        $region34: #{tpu_custom_call.1} parent=31 // pred_check_branch
          %185 = sbr.rel (%p183) target = $region36
        $region35: #{tpu_custom_call.1} parent=31 // pred_region
          %187 = dma.done %s179, 512
        $region36: #{tpu_custom_call.1} parent=31 // pred_fallthru
          _
        %s188 = sand.u32 %s42, 1
        %s189 = scalar_lea.sflag [#allocation5], %s188
        %s190 = sand.u32 %s42, 1
        %s191 = smul.addr %s190, 32
        %s192 = scalar_lea.vmem [#allocation4], %s191
        %p193 = pneg %p55
        %p194 = pneg %p52
        %p195 = pneg %p76
        %p196 = pneg %p73
        %p197 = pneg %p97
        %p198 = pneg %p94
        %p199 = pneg %p123
        %p200 = pneg %p120
        %s201 = sand.u32 %s110, 1
        %s202 = scalar_lea.sflag [#allocation6], %s201
        %s203 = sand.u32 %s110, 1
        %s204 = scalar_lea.vmem [#allocation7], %s203
        %p205 = scmp.eq.s32.totalorder %s25, 0
        // Predicated region
        $region37: #{tpu_custom_call.1} parent=31 // pred_check
          %p206 = pneg %p205
        $region38: #{tpu_custom_call.1} parent=31 // pred_check_branch
          %208 = sbr.rel (%p206) target = $region40
        $region39: #{tpu_custom_call.1} parent=31 // pred_region
          %209 = vst [vmem:[#allocation2] sm:$0xff] 0.0
          %210 = vst [vmem:[#allocation2 + $0x8] sm:$0xff] 0.0
          %211 = vst [vmem:[#allocation2 + $0x10] sm:$0xff] 0.0
          %212 = vst [vmem:[#allocation2 + $0x18] sm:$0xff] 0.0
          %213 = vst [vmem:[#allocation3] sm:$0xff] -inf
          %214 = vst [vmem:[#allocation3 + $0x8] sm:$0xff] -inf
          %215 = vst [vmem:[#allocation3 + $0x10] sm:$0xff] -inf
          %216 = vst [vmem:[#allocation3 + $0x18] sm:$0xff] -inf
        $region40: #{tpu_custom_call.1} parent=31 // pred_fallthru
          _
        %v217 = vld [vmem:[%s182] sm:$0xff]
        %v218 = vld [vmem:[%s182 + $0x8] sm:$0xff]
        %v219 = vld [vmem:[%s182 + $0x10] sm:$0xff]
        %v220 = vld [vmem:[%s182 + $0x18] sm:$0xff]
        %v221 = vld [vmem:[#allocation2] sm:$0xff]
        %v222 = vld [vmem:[#allocation2 + $0x8] sm:$0xff]
        %v223 = vld [vmem:[#allocation2 + $0x10] sm:$0xff]
        %v224 = vld [vmem:[#allocation2 + $0x18] sm:$0xff]
        %v225 = vadd.f32 %v221, %v217
        %v226 = vadd.f32 %v222, %v218
        %v227 = vadd.f32 %v223, %v219
        %v228 = vadd.f32 %v224, %v220
        %229 = vst [vmem:[#allocation2] sm:$0xff] %v225
        %230 = vst [vmem:[#allocation2 + $0x8] sm:$0xff] %v226
        %231 = vst [vmem:[#allocation2 + $0x10] sm:$0xff] %v227
        %232 = vst [vmem:[#allocation2 + $0x18] sm:$0xff] %v228
        %v233 = vld [vmem:[#allocation3] sm:$0xff]
        %v234 = vld [vmem:[#allocation3 + $0x8] sm:$0xff]
        %v235 = vld [vmem:[#allocation3 + $0x10] sm:$0xff]
        %v236 = vld [vmem:[#allocation3 + $0x18] sm:$0xff]
        %v237 = vmax.f32 %v233, %v217
        %v238 = vmax.f32 %v234, %v218
        %v239 = vmax.f32 %v235, %v219
        %v240 = vmax.f32 %v236, %v220
        %241 = vst [vmem:[#allocation3] sm:$0xff] %v237
        %242 = vst [vmem:[#allocation3 + $0x8] sm:$0xff] %v238
        %243 = vst [vmem:[#allocation3 + $0x10] sm:$0xff] %v239
        %244 = vst [vmem:[#allocation3 + $0x18] sm:$0xff] %v240
        %p245 = scmp.eq.s32.totalorder %s25, 1
        // Predicated region
        $region41: #{tpu_custom_call.1} parent=31 // pred_check
          %p246 = pneg %p245
        $region42: #{tpu_custom_call.1} parent=31 // pred_check_branch
          %248 = sbr.rel (%p246) target = $region44
        $region43: #{tpu_custom_call.1} parent=31 // pred_region
          %v249 = vld [vmem:[#allocation2] sm:$0xff]
          %v250 = vld [vmem:[#allocation2 + $0x8] sm:$0xff]
          %v251 = vld [vmem:[#allocation2 + $0x10] sm:$0xff]
          %v252 = vld [vmem:[#allocation2 + $0x18] sm:$0xff]
          %253 = vadd.xlane.f32.xlu0 %v249
          %v254 = vpop.xlane.xlu0 %253
          %255 = vadd.xlane.f32.xlu0 %v250
          %v256 = vpop.xlane.xlu0 %255
          %257 = vadd.xlane.f32.xlu0 %v251
          %v258 = vpop.xlane.xlu0 %257
          %259 = vadd.xlane.f32.xlu0 %v252
          %v260 = vpop.xlane.xlu0 %259
          %v261 = vmul.f32 %v254, 0.00390625
          %v262 = vmul.f32 %v256, 0.00390625
          %v263 = vmul.f32 %v258, 0.00390625
          %v264 = vmul.f32 %v260, 0.00390625
          %v265 = vld [vmem:[#allocation3] sm:$0xff]
          %v266 = vld [vmem:[#allocation3 + $0x8] sm:$0xff]
          %v267 = vld [vmem:[#allocation3 + $0x10] sm:$0xff]
          %v268 = vld [vmem:[#allocation3 + $0x18] sm:$0xff]
          %269 = vmax.xlane.f32.xlu0 %v265
          %v270 = vpop.xlane.xlu0 %269
          %271 = vmax.xlane.f32.xlu0 %v266
          %v272 = vpop.xlane.xlu0 %271
          %273 = vmax.xlane.f32.xlu0 %v267
          %v274 = vpop.xlane.xlu0 %273
          %275 = vmax.xlane.f32.xlu0 %v268
          %v276 = vpop.xlane.xlu0 %275
          %v281 = vlaneseq
          %v282 = vand.u32 %v281, 127
          %v283 = vperm.slane %v261, %v282
          %v284 = vadd.s32 %v282, 4294967288
          %v285 = vperm.slane %v262, %v284
          %vm286 = vcmask 130112
          %v287 = vsel %vm286, %v285, %v283
          %v288 = vadd.s32 %v282, 4294967280
          %v289 = vperm.slane %v263, %v288
          %vm290 = vcmask 195712
          %v291 = vsel %vm290, %v289, %v287
          %v292 = vadd.s32 %v282, 4294967272
          %v293 = vperm.slane %v264, %v292
          %vm294 = vcmask 261312
          %v295 = vsel %vm294, %v293, %v291
          %v301 = vperm.slane %v270, %v282
          %v302 = vperm.slane %v272, %v284
          %v303 = vsel %vm286, %v302, %v301
          %v304 = vperm.slane %v274, %v288
          %v305 = vsel %vm290, %v304, %v303
          %v306 = vperm.slane %v276, %v292
          %v307 = vsel %vm294, %v306, %v305
          %vm309 = vcmask 1040384
          %v310 = vsel %vm309, %v295, %v307
          %v311 = vld [vmem:[%s1] sm:$0xff]
          %v312 = vld [vmem:[%s1 + $0x8] sm:$0xff]
          %v313 = vld [vmem:[%s1 + $0x10] sm:$0xff]
          %v314 = vld [vmem:[%s1 + $0x18] sm:$0xff]
          %v315 = vld [vmem:[%s2] sm:$0x3]
          %vm316 = vcmask 261120
          %v318 = vsel %vm316, %v310, 0
          %320 = vmatpush.msra.mxu0 0.0
          %321 = vmatpush.msra.mxu0 0.0
          %322 = vmatpush.msra.mxu0 0.0
          %323 = vmatpush.msra.mxu0 0.0
          %324 = vmatpush.msra.mxu0 0.0
          %325 = vmatpush.msra.mxu0 0.0
          %326 = vmatpush.msra.mxu0 0.0
          %327 = vmatpush.msra.mxu0 0.0
          %328 = vmatpush.msra.mxu0 0.0
          %329 = vmatpush.msra.mxu0 0.0
          %330 = vmatpush.msra.mxu0 0.0
          %331 = vmatpush.msra.mxu0 0.0
          %332 = vmatpush.msra.mxu0 %v314
          %333 = vmatpush.msra.mxu0 %v313
          %334 = vmatpush.msra.mxu0 %v312
          %335 = vmatpush.msra.mxu0 %v311
          %336 = vmatmul.f32.gmra.mxu0 %v318
          %v337 = vpop.f32.mrf.mxu0
          %v338 = vadd.f32 0.0, %v337
          %339 = vdwg.mxu0
          %v340 = vmax.f32 %v338, 0.0
          %vm341 = vcmask 15360
          %v343 = vsel %vm341, %v340, 0
          %vm345 = vcmask 1041408
          %v347 = vsel %vm345, %v315, 0
          %349 = vmatpush.msra.mxu0 0.0
          %350 = vmatpush.msra.mxu0 0.0
          %351 = vmatpush.msra.mxu0 0.0
          %352 = vmatpush.msra.mxu0 0.0
          %353 = vmatpush.msra.mxu0 0.0
          %354 = vmatpush.msra.mxu0 0.0
          %355 = vmatpush.msra.mxu0 0.0
          %356 = vmatpush.msra.mxu0 0.0
          %357 = vmatpush.msra.mxu0 0.0
          %358 = vmatpush.msra.mxu0 0.0
          %359 = vmatpush.msra.mxu0 0.0
          %360 = vmatpush.msra.mxu0 0.0
          %361 = vmatpush.msra.mxu0 0.0
          %362 = vmatpush.msra.mxu0 0.0
          %363 = vmatpush.msra.mxu0 0.0
          %364 = vmatpush.msra.mxu0 %v347
          %365 = vmatmul.f32.gmra.mxu0 %v343
          %v366 = vpop.f32.mrf.mxu0
          %v367 = vadd.f32 0.0, %v366
          %368 = vdwg.mxu0
          %v370 = vrot.slane %v367, 1
          %v372 = vadd.f32 %v367, %v370
          %v373 = vxor.u32 %v372, 2147483648
          %v374 = vmul.f32 %v373, 1.442695
          %v375 = vpow.pop %v374
          %v376 = vadd.f32 %v375, 1.0
          %v377 = vrcp.pop %v376
          %v378 = vmul.f32 %v376, %v377
          %v379 = vsub.f32 1.0, %v378
          %v380 = vmul.f32 %v377, %v379
          %v381 = vadd.f32 %v377, %v380
          %vm382 = vweird.f32 %v376
          %vm383 = vweird.f32 %v377
          %vm384 = vmor %vm382, %vm383
          %v385 = vsel %vm384, %v377, %v381
          %v386 = vand.u32 2147483647, %v376
          %vm387 = vcmp.eq.f32.partialorder %v386, 8.507059e+37
          %v388 = vand.u32 %v376, 2147483648
          %v389 = vor.u32 1.1754944e-38, %v388
          %v390 = vsel %vm387, %v389, %v385
          %v391 = vmul.f32 1.0, %v390
          %vm392 = vcmask 253952
          %393 = vst.msk [vmem:[%s204] sm:$0x1] %vm392, %v391
        $region44: #{tpu_custom_call.1} parent=31 // pred_fallthru
          _
        %s394 = sand.u32 %s110, 1
        %s395 = scalar_lea.sflag [#allocation6], %s394
        %s396 = sand.u32 %s110, 1
        %s397 = scalar_lea.vmem [#allocation7], %s396
        // Predicated region
        $region45: #{tpu_custom_call.1} parent=31 // pred_check
          %p398 = pneg %p120
        $region46: #{tpu_custom_call.1} parent=31 // pred_check_branch
          %400 = sbr.rel (%p398) target = $region48
        $region47: #{tpu_custom_call.1} parent=31 // pred_region
          %402 = vsyncadd %s395, 0
          %s403 = scalar_lea.hbm %s3, %s24
          %s405 = sshll.u32 %s397, 4
          %s406 = int_to_ptr.vmem [resolvable:$true] %s405
          %s407 = sshll.u32 %s403, 4
          %s408 = int_to_ptr.hbm [resolvable:$true] %s407
          %410 = dma.vmem_to_hbm [thread:$0]  %s406, 16, %s408, %s395
        $region48: #{tpu_custom_call.1} parent=31 // pred_fallthru
          _
      $region32: #{tpu_custom_call.1} parent=5 // pred_fallthru
        _
      %p411 = scmp.le.s32.totalorder 2, %s15
      // Predicated region
      $region49: #{tpu_custom_call.1} parent=5 // pred_check
        %p412 = pneg %p411
      $region50: #{tpu_custom_call.1} parent=5 // pred_check_branch
        %414 = sbr.rel (%p412) target = $region52
      $region51: #{tpu_custom_call.1} parent=5 // pred_region
        %s415 = ssub.s32 %s15, 2
        // Predicated region
        $region53: #{tpu_custom_call.1} parent=51 // pred_check
          %p416 = pneg %p126
        $region54: #{tpu_custom_call.1} parent=51 // pred_check_branch
          %418 = sbr.rel (%p416) target = $region56
        $region55: #{tpu_custom_call.1} parent=51 // pred_region
          %s419 = sand.u32 %s111, 1
          %s420 = scalar_lea.sflag [#allocation6], %s419
          %s421 = sand.u32 %s111, 1
          %s422 = scalar_lea.vmem [#allocation7], %s421
          %424 = dma.done %s420, 16
        $region56: #{tpu_custom_call.1} parent=51 // pred_fallthru
          _
      $region52: #{tpu_custom_call.1} parent=5 // pred_fallthru
        _
    $region6: #{tpu_custom_call.1} parent=1 // loop_footer
      %s19 = sadd.s32 1, %s15
    $region7: #{tpu_custom_call.1} parent=1 // loop_footer_branch
      %14 = sbr.rel target = $region3
    $region8: #{tpu_custom_call.1} parent=1 // loop_exit
      _
    %425 = vsyncpa [#allocation5], 1
    %s426 = scalar_lea.sflag [#allocation5], 1
    %427 = vsyncpa %s426, 1
    %428 = vsyncpa [#allocation6], 1
    %s429 = scalar_lea.sflag [#allocation6], 1
    %430 = vsyncpa %s429, 1

</llo_original>
